<compile_context>
chip_gen: v7x
topology: tpu7x:2x2x1
jax: 0.10.0
libtpu: 0.0.40
codegen_flags: <defaults>
</compile_context>

<pallas_src>
import functools

import jax
import jax.numpy as jnp
from jax import lax
from jax.experimental import pallas as pl
from jax.experimental.pallas import tpu as pltpu

_LANES = 128          # vreg lane width
_ROW_ALIGN = 16       # row-tile alignment (covers f32 sublanes=8 and bf16 packing=16)
_MAX_TILE_ROWS = 2048 # diminishing returns past ~2k rows (per-step overhead amortized)
_MEGACORE_SPLIT_MIN_ROWS = 1024  # split single-tile problems so 2 TCs can share


def _round_up(x: int, m: int) -> int:
    return ((x + m - 1) // m) * m


def make_grap_weight(hidden_dim: int, num_experts: int, dtype=jnp.float32):
    """Reference waff buffer identical to the PyTorch __init__:  [E, H]."""
    assert hidden_dim % num_experts == 0
    group_size = hidden_dim // num_experts
    scale = num_experts / hidden_dim
    expert_ids = jnp.arange(num_experts)[:, None]               # [E, 1]
    col_group = jnp.arange(hidden_dim)[None, :] // group_size   # [1, H]
    return jnp.where(col_group == expert_ids, scale, 0.0).astype(dtype)


def _grap_kernel(x_ref, o_ref, *, hidden_dim, num_experts, group_size, scale, e_pad):
    # Build the grouped-average weight on the fly in [H, E_pad] layout.
    # Multiply/compare formulation (no vector integer division needed).
    row = lax.broadcasted_iota(jnp.int32, (hidden_dim, e_pad), 0)
    col = lax.broadcasted_iota(jnp.int32, (hidden_dim, e_pad), 1)
    lo = col * group_size
    in_group = (row >= lo) & (row < lo + group_size)     # padded cols (>=E) stay 0
    # Weight kept in x's dtype so bf16 inputs stay on the bf16 MXU fast path.
    # NOTE: for bf16 x the scale E/H is rounded to bf16 (documented tolerance).
    w = jnp.where(in_group, jnp.float32(scale), jnp.float32(0.0)).astype(x_ref.dtype)

    # TODO(synk): for f32 activations on v5e/v7x, a bf16 dot (f32 acc) or a
    # segmented sum avoids the multi-pass f32 MXU becoming the binding unit.
    acc = jnp.dot(x_ref[...], w, preferred_element_type=jnp.float32)  # [tm, E_pad] f32
    o_ref[...] = acc[:, :num_experts].astype(o_ref.dtype)             # unpadded store


@functools.lru_cache(maxsize=1)
def _vmem_budget_and_limit():
    """Generation-aware VMEM tile budget / scoped limit (bytes)."""
    cap = None
    try:
        info = pltpu.get_tpu_info()
        cap = getattr(info, "vmem_capacity_bytes", None)
    except Exception:
        cap = None
    if not cap or cap <= 0:
        cap = 64 * 1024 * 1024  # conservative fallback: v7x per-TC physical VMEM
    budget = int(cap * 0.55)    # ~35 MiB on v7x, ~70 MiB on v5e/v6e
    limit = int(cap * 0.75)     # ~48 MiB on v7x, ~96 MiB on v5e/v6e (< physical)
    return budget, limit


def _choose_tile_rows(n_rows: int, hidden: int, e_pad: int, itemsize: int,
                      vmem_budget_bytes: int) -> int:
    """Largest row tile whose footprint fits the VMEM budget."""
    weight_bytes = hidden * e_pad * 4            # in-kernel transient weight (1 copy)
    # Guard against pathological configs where even the weight doesn't fit.
    # TODO(synk): tile the expert dimension with a second grid axis if this fires.
    assert weight_bytes < vmem_budget_bytes // 2, (
        "GrAP weight tile too large for VMEM; tile the expert dimension.")
    per_row = 2 * hidden * itemsize              # double-buffered input tile
    per_row += 2 * e_pad * itemsize              # double-buffered output tile
    per_row += e_pad * 4                         # f32 accumulator
    tm = (vmem_budget_bytes - weight_bytes) // per_row
    tm = min(max(tm, _ROW_ALIGN), _MAX_TILE_ROWS)
    tm = (tm // _ROW_ALIGN) * _ROW_ALIGN
    if tm >= n_rows:
        if n_rows >= _MEGACORE_SPLIT_MIN_ROWS:
            # Keep >=2 row tiles so the "parallel" axis can shard across
            # both v7x TensorCores instead of idling one.
            return _round_up(pl.cdiv(n_rows, 2), _ROW_ALIGN)
        return n_rows                            # full extent is always legal
    return tm


@functools.partial(jax.jit, static_argnames=("num_experts",))
def grap_layer(x: jax.Array, num_experts: int) -> jax.Array:
    """x: [B, S, H]  ->  [B, S, num_experts]  (GrAP grouped average pooling)."""
    B, S, H = x.shape
    assert H % num_experts == 0, "hidden_dim must be divisible by num_experts"
    group_size = H // num_experts
    scale = float(num_experts) / float(H)
    e_pad = _round_up(num_experts, _LANES)

    n_rows = B * S
    x2d = x.reshape(n_rows, H)
    itemsize = jnp.dtype(x.dtype).itemsize

    budget, vmem_limit = _vmem_budget_and_limit()
    tm = _choose_tile_rows(n_rows, H, e_pad, itemsize, budget)
    grid = (pl.cdiv(n_rows, tm),)   # partial last tile handled by Pallas masking

    kernel = functools.partial(
        _grap_kernel, hidden_dim=H, num_experts=num_experts,
        group_size=group_size, scale=scale, e_pad=e_pad)

    cost = pl.CostEstimate(
        flops=2 * n_rows * H * e_pad,
        transcendentals=0,
        bytes_accessed=n_rows * H * itemsize + n_rows * num_experts * itemsize,
    )

    out = pl.pallas_call(
        kernel,
        out_shape=jax.ShapeDtypeStruct((n_rows, num_experts), x.dtype),
        grid_spec=pltpu.PrefetchScalarGridSpec(
            num_scalar_prefetch=0,
            grid=grid,
            in_specs=[pl.BlockSpec((tm, H), lambda i: (i, 0))],          # streamed rows
            out_specs=pl.BlockSpec((tm, num_experts), lambda i: (i, 0)),  # unpadded out
        ),
        compiler_params=pltpu.CompilerParams(
            # Row tiles are independent -> megacore sharding on v7x (2 TCs).
            dimension_semantics=("parallel",),
            vmem_limit_bytes=vmem_limit,
        ),
        cost_estimate=cost,
    )(x2d)

    return out.reshape(B, S, num_experts)


if __name__ == "__main__":
    batch, seq, hidden_dim, num_experts = 2, 8, 32, 4

    key = jax.random.PRNGKey(0)
    x = jax.random.normal(key, (batch, seq, hidden_dim), dtype=jnp.float32)

    y = grap_layer(x, num_experts=num_experts)
    y = jax.block_until_ready(y)

    # Reference: same math as torch.matmul(x, waff.t())
    waff = make_grap_weight(hidden_dim, num_experts, dtype=jnp.float32)  # [E, H]
    y_ref = jnp.einsum("bsh,eh->bse", x, waff)

    assert y.shape == (batch, seq, num_experts)
    assert jnp.allclose(y, y_ref, atol=1e-5, rtol=1e-5)

    print("KERNEL_OK")
</pallas_src>

<mosaic_0001>
module attributes {stable_mosaic.version = 11 : i64} {
  func.func @_grap_kernel(%arg0: i32, %arg1: memref<16x32xf32, #tpu.memory_space<vmem>>, %arg2: memref<16x4xf32, #tpu.memory_space<vmem>>) attributes {dimension_semantics = [#tpu.dimension_semantics<parallel>], iteration_bounds = array<i64: 1>, scalar_prefetch = 0 : i64, scratch_operands = 0 : i64, tpu.core_type = #tpu.core_type<tc>, window_params = [{transform_indices = @transform_0, window_bounds = array<i64: 16, 32>}, {transform_indices = @transform_1, window_bounds = array<i64: 16, 4>}]} {
    %0 = tpu.iota {dimensions = array<i32: 0>} : vector<32x128xi32>
    %1 = tpu.iota {dimensions = array<i32: 1>} : vector<32x128xi32>
    %c8_i32 = arith.constant 8 : i32
    %2 = vector.broadcast %c8_i32 : i32 to vector<32x128xi32>
    %3 = arith.muli %1, %2 : vector<32x128xi32>
    %4 = arith.cmpi sge, %0, %3 : vector<32x128xi32>
    %c8_i32_0 = arith.constant 8 : i32
    %5 = vector.broadcast %c8_i32_0 : i32 to vector<32x128xi32>
    %6 = arith.addi %3, %5 : vector<32x128xi32>
    %7 = arith.cmpi slt, %0, %6 : vector<32x128xi32>
    %8 = arith.andi %4, %7 : vector<32x128xi1>
    %cst = arith.constant 1.250000e-01 : f32
    %cst_1 = arith.constant 0.000000e+00 : f32
    %9 = vector.broadcast %cst : f32 to vector<32x128xf32>
    %10 = vector.broadcast %cst_1 : f32 to vector<32x128xf32>
    %11 = arith.select %8, %9, %10 : vector<32x128xi1>, vector<32x128xf32>
    %c0 = arith.constant 0 : index
    %c0_2 = arith.constant 0 : index
    %12 = vector.load %arg1[%c0, %c0_2] : memref<16x32xf32, #tpu.memory_space<vmem>>, vector<16x32xf32>
    %cst_3 = arith.constant dense<0.000000e+00> : vector<16x128xf32>
    %13 = tpu.matmul %12, %11, %cst_3 {dimension_numbers = #tpu.dot_dimension_numbers<[1], [0], [0], [1], [0, 0, 1, 1], [], []>} : vector<16x32xf32>, vector<32x128xf32>, vector<16x128xf32> -> vector<16x128xf32>
    %14 = vector.extract_strided_slice %13 {offsets = [0, 0], sizes = [16, 4], strides = [1, 1]} : vector<16x128xf32> to vector<16x4xf32>
    %c0_4 = arith.constant 0 : index
    %c0_5 = arith.constant 0 : index
    %15 = vector.load %arg2[%c0_4, %c0_5] : memref<16x4xf32, #tpu.memory_space<vmem>>, vector<16x4xf32>
    tpu.vector_store %arg2[%c0_4, %c0_5], %14 {strides = array<i32>} : memref<16x4xf32, #tpu.memory_space<vmem>>, vector<16x4xf32>,
    return
  }
  func.func @transform_0(%arg0: i32) -> (i32, i32) {
    %c0_i32 = arith.constant 0 : i32
    %c0_i32_0 = arith.constant 0 : i32
    return %arg0, %c0_i32 : i32, i32
  }
  func.func @transform_1(%arg0: i32) -> (i32, i32) {
    %c0_i32 = arith.constant 0 : i32
    %c0_i32_0 = arith.constant 0 : i32
    return %arg0, %c0_i32 : i32, i32
  }
}

</mosaic_0001>

<llo_original>
// kernel: grap_layer.1
$region0: #{grap_layer.1}
  #allocation0 [shape = 'u32[]', space=smem, size = 0x4, offset = 0x4, fixed_abs, tag = 'smem constant byte address 0x4 - core index']
  #allocation1 [shape = 'u32[144,128]{1,0:T(1,128)}', space=vmem, size = 0x12000, scoped, tag = 'internal scratch']
  %s0 = inlined_call_operand.hbm [shape: f32[16,32], index: 0, kind: input, shape index: {}]
  %s1 = inlined_call_operand.vmem [shape: f32[16,4], index: 1, kind: output, shape index: {}]
  %s2 = sld [smem:[#allocation0]]
  $region18: #{grap_layer.1} parent=0
    _
  %s4 = ssub.s32 1, %s2
  %s5 = scalar_select 0, %s4, %s2
  $region1: #{grap_layer.1} parent=0
    #allocation2 [shape = 'u8[8192]{0}', space=vmem, size = 0x2000, scoped, tag = 'input window, operand 0, single buffered']
    #allocation3 [shape = 's32[1]{0}', space=sflag, size = 0x4, scoped, tag = 'scoped memory for grap_layer.1']
    %6 = vsyncpa [#allocation3], 0
    // Predicated region
    $region2: #{grap_layer.1} parent=1 // pred_check
      _
    $region3: #{grap_layer.1} parent=1 // pred_check_branch
      %8 = sbr.rel (0) target = $region5
    $region4: #{grap_layer.1} parent=1 // pred_region
      %s10 = ssub.s32 256, 256
      %11 = vsyncadd [#allocation3], %s10
      %s12 = sshll.u32 [#allocation2], 4
      %s13 = int_to_ptr.vmem [resolvable:$true] %s12
      %18 = dma.hbm_to_vmem [thread:$0]  %s0, 256, %s13, [#allocation3], 128, 128, 8
    $region5: #{grap_layer.1} parent=1 // pred_fallthru
      _
    // Predicated region
    $region6: #{grap_layer.1} parent=1 // pred_check
      _
    $region7: #{grap_layer.1} parent=1 // pred_check_branch
      %20 = sbr.rel (0) target = $region9
    $region8: #{grap_layer.1} parent=1 // pred_region
      %21 = dma.done [#allocation3], 256
    $region9: #{grap_layer.1} parent=1 // pred_fallthru
      _
    %v22 = vlaneseq
    %v23 = vshrl.u32 %v22, 7
    %v24 = vadd.s32 %v23, 8
    %v25 = vadd.s32 %v23, 16
    %v26 = vadd.s32 %v23, 24
    %v27 = vlaneseq
    %v28 = vand.u32 %v27, 127
    %v29 = vmul.u32 %v28, 8
    %vm30 = vcmp.ge.s32.totalorder %v23, %v29
    %vm31 = vcmp.ge.s32.totalorder %v24, %v29
    %vm32 = vcmp.ge.s32.totalorder %v25, %v29
    %vm33 = vcmp.ge.s32.totalorder %v26, %v29
    %v34 = vadd.s32 %v29, 8
    %vm35 = vcmp.lt.s32.totalorder %v23, %v34
    %vm36 = vcmp.lt.s32.totalorder %v24, %v34
    %vm37 = vcmp.lt.s32.totalorder %v25, %v34
    %vm38 = vcmp.lt.s32.totalorder %v26, %v34
    %vm39 = vmand %vm30, %vm35
    %vm40 = vmand %vm31, %vm36
    %vm41 = vmand %vm32, %vm37
    %vm42 = vmand %vm33, %vm38
    %v43 = vsel %vm39, 0.125, 0.0
    %v44 = vsel %vm40, 0.125, 0.0
    %v45 = vsel %vm41, 0.125, 0.0
    %v46 = vsel %vm42, 0.125, 0.0
    %v47 = vld [vmem:[#allocation2] sm:$0xff]
    %v48 = vld [vmem:[#allocation2 + $0x8] sm:$0xff]
    %vm49 = vcmask 261120
    %v51 = vsel %vm49, %v47, 0
    %v54 = vsel %vm49, %v48, 0
    %56 = vmatprep.subr.mxu0 0.0
    %57 = vmatpush1.msra.mxu0 %v43
    %58 = vmatprep.subr.mxu0 0.0
    %59 = vmatpush1.msra.mxu0 %v44
    %60 = vmatprep.subr.mxu0 0.0
    %61 = vmatpush1.msra.mxu0 %v45
    %62 = vmatprep.subr.mxu0 0.0
    %63 = vmatpush1.msra.mxu0 %v46
    %64 = vmatprep.subr.mxu0 0.0
    %65 = vmatpush1.msra.mxu0 0.0
    %66 = vmatprep.subr.mxu0 0.0
    %67 = vmatpush1.msra.mxu0 0.0
    %68 = vmatprep.subr.mxu0 0.0
    %69 = vmatpush1.msra.mxu0 0.0
    %70 = vmatprep.subr.mxu0 0.0
    %71 = vmatpush1.msra.mxu0 0.0
    %72 = vmatprep.subr.mxu0 0.0
    %73 = vmatpush1.msra.mxu0 0.0
    %74 = vmatprep.subr.mxu0 0.0
    %75 = vmatpush1.msra.mxu0 0.0
    %76 = vmatprep.subr.mxu0 0.0
    %77 = vmatpush1.msra.mxu0 0.0
    %78 = vmatprep.subr.mxu0 0.0
    %79 = vmatpush1.msra.mxu0 0.0
    %80 = vmatprep.subr.mxu0 0.0
    %81 = vmatpush1.msra.mxu0 0.0
    %82 = vmatprep.subr.mxu0 0.0
    %83 = vmatpush1.msra.mxu0 0.0
    %84 = vmatprep.subr.mxu0 0.0
    %85 = vmatpush1.msra.mxu0 0.0
    %86 = vmatprep.subr.mxu0 0.0
    %87 = vmatpush1.msra.mxu0 0.0
    %88 = vmatprep.subr.mxu0 0.0
    %89 = vmatpush1.msra.mxu0 0.0
    %90 = vmatprep.subr.mxu0 0.0
    %91 = vmatpush1.msra.mxu0 0.0
    %92 = vmatprep.subr.mxu0 0.0
    %93 = vmatpush1.msra.mxu0 0.0
    %94 = vmatprep.subr.mxu0 0.0
    %95 = vmatpush1.msra.mxu0 0.0
    %96 = vmatprep.subr.mxu0 0.0
    %97 = vmatpush1.msra.mxu0 0.0
    %98 = vmatprep.subr.mxu0 0.0
    %99 = vmatpush1.msra.mxu0 0.0
    %100 = vmatprep.subr.mxu0 0.0
    %101 = vmatpush1.msra.mxu0 0.0
    %102 = vmatprep.subr.mxu0 0.0
    %103 = vmatpush1.msra.mxu0 0.0
    %104 = vmatprep.subr.mxu0 0.0
    %105 = vmatpush1.msra.mxu0 0.0
    %106 = vmatprep.subr.mxu0 0.0
    %107 = vmatpush1.msra.mxu0 0.0
    %108 = vmatprep.subr.mxu0 0.0
    %109 = vmatpush1.msra.mxu0 0.0
    %110 = vmatprep.subr.mxu0 0.0
    %111 = vmatpush1.msra.mxu0 0.0
    %112 = vmatprep.subr.mxu0 0.0
    %113 = vmatpush1.msra.mxu0 0.0
    %114 = vmatprep.subr.mxu0 0.0
    %115 = vmatpush1.msra.mxu0 0.0
    %116 = vmatprep.subr.mxu0 0.0
    %117 = vmatpush1.msra.mxu0 0.0
    %118 = vmatprep.subr.mxu0 0.0
    %119 = vmatpush1.msra.mxu0 0.0
    %120 = vmatprep.mubr.f32.mxu0 0.0
    %121 = vmatmul.mubr.f32.gmra.mrb[0].mxu0 %v51
    %v122 = vpop.f32.mrb[0].mxu0
    %v123 = vadd.f32 0.0, %v122
    %v124 = vpop.f32.mrb[0].mxu0
    %125 = vmatprep.mubr.f32.mxu0 0.0
    %126 = vmatmul.mubr.f32.gmra.mrb[0].mxu0 %v54
    %v127 = vpop.f32.mrb[0].mxu0
    %v128 = vadd.f32 0.0, %v127
    %v129 = vpop.f32.mrb[0].mxu0
    %130 = vdwg.mxu0
    %vm131 = vcmask 31744
    %132 = vst.msk [vmem:[%s1] sm:$0xff] %vm131, %v123
    %133 = vst.msk [vmem:[%s1 + $0x8] sm:$0xff] %vm131, %v128
    // Predicated region
    $region10: #{grap_layer.1} parent=1 // pred_check
      _
    $region11: #{grap_layer.1} parent=1 // pred_check_branch
      %135 = sbr.rel (0) target = $region13
    $region12: #{grap_layer.1} parent=1 // pred_region
      _
    $region13: #{grap_layer.1} parent=1 // pred_fallthru
      _
    // Predicated region
    $region14: #{grap_layer.1} parent=1 // pred_check
      _
    $region15: #{grap_layer.1} parent=1 // pred_check_branch
      %137 = sbr.rel (0) target = $region17
    $region16: #{grap_layer.1} parent=1 // pred_region
      _
    $region17: #{grap_layer.1} parent=1 // pred_fallthru
      _
    %138 = vsyncpa [#allocation3], 1

</llo_original>
